<compile_context>
chip_gen: v5e
topology: v5e:2x2
jax: 0.10.0
libtpu: 0.0.40
codegen_flags: <defaults>
</compile_context>

<pallas_src>
import jax
import jax.numpy as jnp
import numpy as np
from jax.experimental import pallas as pl
from jax.experimental.pallas import tpu as pltpu

LANE_PACK = 64            # raw rows packed per lane-row: 64 * 26 = 1664 = 13 * 128 lanes (exact)
MAX_PACKED_TILE = 2048    # packed rows per grid step (= 131072 raw rows), ~30 MiB VMEM double-buffered
VMEM_LIMIT_BYTES = 48 * 1024 * 1024


def _round_up(n, m):
    return -(-n // m) * m


def net_kernel(x_ref, w_ref, b_ref, out_ref):
    """One batch tile.

    x_ref  : (TBp, 1664)  64 raw input rows packed per lane-row (free row-major reshape);
                          the stride-2 pool is encoded as zero rows inside the folded weight.
    w_ref  : (1664, 128)  block-diagonal folded logit-difference weights
                          (64 copies of the (26, 2) folded map on the diagonal).
    b_ref  : (1, 128)     folded logit-difference bias, tiled 64x.
    out_ref: (TBp, 128)   class probabilities, 64 (row, 2-class) pairs per lane-row;
                          softmax(l)_j == sigmoid(l_j - l_{1-j}) for 2 classes.
    """
    z = jnp.dot(x_ref[...], w_ref[...],
                preferred_element_type=jnp.float32) + b_ref[...]          # (TBp, 128)
    # Exact sigmoid: epilogue is ~64 vregs per MXU-bound tile, so approx=True buys nothing
    # here and exactness keeps 1e-5 agreement with the reference.
    out_ref[...] = pl.reciprocal(1.0 + jnp.exp(-z)).astype(out_ref.dtype)


def init_params(key):
    """Deterministic PyTorch-style uniform(-1/sqrt(fan_in), 1/sqrt(fan_in)) init."""
    ks = jax.random.split(key, 8)

    def u(k, shape, fan_in):
        bound = 1.0 / np.sqrt(fan_in)
        return jax.random.uniform(k, shape, jnp.float32, -bound, bound)

    return dict(
        w1=u(ks[0], (10, 1, 1), 1),    b1=u(ks[1], (10,), 1),      # conv1
        w2=u(ks[2], (10, 10, 1), 10),  b2=u(ks[3], (10,), 10),     # conv2
        wl1=u(ks[4], (1, 13), 13),     bl1=u(ks[5], (1,), 13),     # liner1
        wl2=u(ks[6], (2, 10), 10),     bl2=u(ks[7], (2,), 10),     # liner2
    )


def fold_params(p, L, R):
    """Fold conv1 -> pool(s=2) -> conv2 -> liner1 -> liner2 into a lane-packed
    block-diagonal weight (R*L, 2R) plus bias (1, 2R) of logit differences."""
    f32 = jnp.float32
    w1 = p['w1'].astype(f32)[:, 0, 0]       # (10,)
    b1 = p['b1'].astype(f32)                # (10,)
    W2 = p['w2'].astype(f32)[:, :, 0]       # (10, 10)
    b2 = p['b2'].astype(f32)                # (10,)
    wl1 = p['wl1'].astype(f32)[0]           # (Lp,)
    bl1 = p['bl1'].astype(f32)[0]           # ()
    Wl2 = p['wl2'].astype(f32)              # (2, 10)
    bl2 = p['bl2'].astype(f32)              # (2,)

    Lp = wl1.shape[0]
    assert Lp == (L + 1) // 2, "liner1 width must match stride-2 pooled length"

    a = W2 @ w1                                   # conv2(conv1) per-channel gain
    beta = W2 @ b1 + b2                           # conv2(conv1) per-channel bias
    v = Wl2 @ a                                   # per-class gain on u = xp . wl1
    d = Wl2 @ (beta * jnp.sum(wl1) + bl1) + bl2   # per-class bias
    # logits[b, j] = v[j] * (sum_l wl1[l] * x[b, 2l]) + d[j]

    vd = v - v[::-1]                              # (2,)  v_j - v_{1-j}
    dd = d - d[::-1]                              # (2,)  d_j - d_{1-j}
    Wd13 = wl1[:, None] * vd[None, :]             # (Lp, 2)
    # Stride-2 max_pool1 folded as zero rows at odd input positions.
    Wd = jnp.zeros((L, 2), f32).at[0::2, :].set(Wd13)          # (L, 2)

    # Lane packing: R copies of Wd on the block diagonal -> (R*L, 2R), bias tiled Rx.
    Wp = jnp.einsum('rs,lc->rlsc', jnp.eye(R, dtype=f32), Wd).reshape(R * L, R * 2)
    bp = jnp.tile(dd, R)[None, :]                               # (1, 2R)
    return Wp, bp


@jax.jit
def net_forward(x, p):
    B, c_in, L = x.shape
    assert c_in == 1
    R = LANE_PACK
    K = R * L                                   # 1664 = 13 * 128 lanes (exactly dense)
    N = 2 * R                                   # 128 output lanes (exactly dense)

    x2d = x.reshape(B, L).astype(jnp.float32)
    Wp, bp = fold_params(p, L, R)

    # --- batch tiling -------------------------------------------------------
    Np = -(-B // R)                             # packed rows needed
    num_tiles = -(-Np // MAX_PACKED_TILE)
    if Np > 8:
        num_tiles = max(num_tiles, 2)           # v7x: >=2 grid steps so both TCs get work
    TBp = _round_up(-(-Np // num_tiles), 8)     # packed rows per tile (sublane multiple of 8)
    Np_pad = TBp * num_tiles
    Bp = Np_pad * R
    if Bp != B:                                 # zero-pad; waste is <= ~8 packed rows per tile
        x2d = jnp.pad(x2d, ((0, Bp - B), (0, 0)))
    xp = x2d.reshape(Np_pad, K)                 # FREE row-major reshape: 64 rows per lane-row

    out = pl.pallas_call(
        net_kernel,
        out_shape=jax.ShapeDtypeStruct((Np_pad, N), jnp.float32),
        grid=(num_tiles,),
        in_specs=[
            pl.BlockSpec((TBp, K), lambda i: (i, 0)),     # batch-tiled packed input
            pl.BlockSpec((K, N), lambda i: (0, 0)),       # folded weights, resident
            pl.BlockSpec((1, N), lambda i: (0, 0)),       # folded bias, resident
        ],
        out_specs=pl.BlockSpec((TBp, N), lambda i: (i, 0)),
        compiler_params=pltpu.CompilerParams(
            dimension_semantics=("parallel",),            # shard tiles across v7x's 2 TCs
            vmem_limit_bytes=VMEM_LIMIT_BYTES,            # ~30 MiB needed at max tile
        ),
    )(xp, Wp, bp)

    # FREE row-major reshape back to (rows, 2 classes), then drop padding rows.
    return out.reshape(Np_pad * R, 2)[:B]


def ref_forward(x, p):
    """Pure-JAX reference mirroring the PyTorch forward exactly (in f32)."""
    x = x.astype(jnp.float32)
    h = jnp.einsum('co,bol->bcl', p['w1'][:, :, 0], x) + p['b1'][None, :, None]   # conv1
    h = h[:, :, ::2]                                                              # max_pool1
    h = jnp.einsum('ck,bkl->bcl', p['w2'][:, :, 0], h) + p['b2'][None, :, None]   # conv2
    # max_pool2 == identity
    h = jnp.einsum('bcl,ol->bco', h, p['wl1']) + p['bl1']                         # liner1
    h = h[:, :, 0]                                                                # squeeze(2)
    h = h @ p['wl2'].T + p['bl2']                                                 # liner2
    return jax.nn.softmax(h, axis=1)


if __name__ == "__main__":
    key = jax.random.PRNGKey(0)
    kx, kp = jax.random.split(key)

    # Linear(13, 1) after stride-2 pooling implies input length 26.
    x = jax.random.normal(kx, (2, 1, 26), jnp.float32)
    params = init_params(kp)

    out = net_forward(x, params)
    jax.block_until_ready(out)

    ref = ref_forward(x, params)
    np.testing.assert_allclose(np.asarray(out), np.asarray(ref), rtol=1e-5, atol=1e-5)

    print("KERNEL_OK")
</pallas_src>

<mosaic_0001>
module attributes {stable_mosaic.version = 11 : i64} {
  func.func @net_kernel(%arg0: i32, %arg1: memref<8x1664xf32, #tpu.memory_space<vmem>>, %arg2: memref<1664x128xf32, #tpu.memory_space<vmem>>, %arg3: memref<1x128xf32, #tpu.memory_space<vmem>>, %arg4: memref<8x128xf32, #tpu.memory_space<vmem>>) attributes {dimension_semantics = [#tpu.dimension_semantics<parallel>], iteration_bounds = array<i64: 1>, scalar_prefetch = 0 : i64, scratch_operands = 0 : i64, tpu.core_type = #tpu.core_type<tc>, window_params = [{transform_indices = @transform_0, window_bounds = array<i64: 8, 1664>}, {pipeline_mode = #tpu.pipeline_mode<synchronous>, transform_indices = @transform_1, window_bounds = array<i64: 1664, 128>}, {pipeline_mode = #tpu.pipeline_mode<synchronous>, transform_indices = @transform_2, window_bounds = array<i64: 1, 128>}, {transform_indices = @transform_3, window_bounds = array<i64: 8, 128>}]} {
    %c0 = arith.constant 0 : index
    %c0_0 = arith.constant 0 : index
    %0 = vector.load %arg1[%c0, %c0_0] : memref<8x1664xf32, #tpu.memory_space<vmem>>, vector<8x1664xf32>
    %c0_1 = arith.constant 0 : index
    %c0_2 = arith.constant 0 : index
    %1 = vector.load %arg2[%c0_1, %c0_2] : memref<1664x128xf32, #tpu.memory_space<vmem>>, vector<1664x128xf32>
    %cst = arith.constant dense<0.000000e+00> : vector<8x128xf32>
    %2 = tpu.matmul %0, %1, %cst {dimension_numbers = #tpu.dot_dimension_numbers<[1], [0], [0], [1], [0, 0, 1, 1], [], []>} : vector<8x1664xf32>, vector<1664x128xf32>, vector<8x128xf32> -> vector<8x128xf32>
    %c0_3 = arith.constant 0 : index
    %c0_4 = arith.constant 0 : index
    %3 = vector.load %arg3[%c0_3, %c0_4] : memref<1x128xf32, #tpu.memory_space<vmem>>, vector<1x128xf32>
    %4 = vector.broadcast %3 : vector<1x128xf32> to vector<8x128xf32>
    %5 = arith.addf %2, %4 : vector<8x128xf32>
    %cst_5 = arith.constant 0.000000e+00 : f32
    %6 = vector.broadcast %cst_5 : f32 to vector<8x128xf32>
    %7 = arith.subf %6, %5 : vector<8x128xf32>
    %8 = math.exp %7 : vector<8x128xf32>
    %cst_6 = arith.constant 1.000000e+00 : f32
    %9 = vector.broadcast %cst_6 : f32 to vector<8x128xf32>
    %10 = arith.addf %9, %8 : vector<8x128xf32>
    %11 = tpu.reciprocal %10 : vector<8x128xf32> -> vector<8x128xf32>
    %c0_7 = arith.constant 0 : index
    %c0_8 = arith.constant 0 : index
    %12 = vector.load %arg4[%c0_7, %c0_8] : memref<8x128xf32, #tpu.memory_space<vmem>>, vector<8x128xf32>
    tpu.vector_store %arg4[%c0_7, %c0_8], %11 {strides = array<i32>} : memref<8x128xf32, #tpu.memory_space<vmem>>, vector<8x128xf32>,
    return
  }
  func.func @transform_0(%arg0: i32) -> (i32, i32) {
    %c0_i32 = arith.constant 0 : i32
    %c0_i32_0 = arith.constant 0 : i32
    return %arg0, %c0_i32 : i32, i32
  }
  func.func @transform_1(%arg0: i32) -> (i32, i32) {
    %c0_i32 = arith.constant 0 : i32
    %c0_i32_0 = arith.constant 0 : i32
    %c0_i32_1 = arith.constant 0 : i32
    return %c0_i32, %c0_i32_0 : i32, i32
  }
  func.func @transform_2(%arg0: i32) -> (i32, i32) {
    %c0_i32 = arith.constant 0 : i32
    %c0_i32_0 = arith.constant 0 : i32
    %c0_i32_1 = arith.constant 0 : i32
    return %c0_i32, %c0_i32_0 : i32, i32
  }
  func.func @transform_3(%arg0: i32) -> (i32, i32) {
    %c0_i32 = arith.constant 0 : i32
    %c0_i32_0 = arith.constant 0 : i32
    return %arg0, %c0_i32 : i32, i32
  }
}

</mosaic_0001>

<llo_original>
// kernel: sub.2
$region0: #{sub.2}
  #allocation0 [shape = 's32[1]{0}', space=sflag, size = 0x4, scoped, tag = 'scoped memory for sub.2']
  %s0 = inlined_call_operand.vmem [shape: f32[2], index: 0, kind: input, shape index: {}]
  %s1 = inlined_call_operand.vmem [shape: f32[2], index: 1, kind: input, shape index: {}]
  %s2 = inlined_call_operand.vmem [shape: f32[2], index: 2, kind: output, shape index: {}]
  %v3 = vld [vmem:[%s0] sm:$0x1]
  %v4 = vld [vmem:[%s1] sm:$0x1]
  %5 = xla_tuple %v3, %v4
  %6 = xla_tuple %5
  %v7 = vsub.f32 %v3, %v4
  %8 = xla_tuple %v7
  %9 = vst [vmem:[%s2] sm:$0x1] %v7

// kernel: tile.8
$region0: #{tile.8}
  #allocation0 [shape = 's32[1]{0}', space=sflag, size = 0x4, scoped, tag = 'scoped memory for tile.8']
  %s0 = inlined_call_operand.vmem [shape: f32[2], index: 0, kind: input, shape index: {}]
  %s1 = inlined_call_operand.vmem [shape: f32[64,2], index: 1, kind: output, shape index: {}]
  // Predicated region
  $region2: #{tile.8} parent=0 // pred_check
    _
  $region3: #{tile.8} parent=0 // pred_check_branch
    %3 = sbr.rel (0) target = $region5
  $region4: #{tile.8} parent=0 // pred_region
    _
  $region5: #{tile.8} parent=0 // pred_fallthru
    _
  %v4 = vld [vmem:[%s0] ss:$0 sm:$0xff]
  %5 = vst [vmem:[%s1] sm:$0xff] %v4
  %s6 = scalar_lea.vmem %s1, 8
  %7 = vst [vmem:[%s6] sm:$0xff] %v4
  %s8 = scalar_lea.vmem %s1, 16
  %9 = vst [vmem:[%s8] sm:$0xff] %v4
  %s10 = scalar_lea.vmem %s1, 24
  %11 = vst [vmem:[%s10] sm:$0xff] %v4
  %s12 = scalar_lea.vmem %s1, 32
  %13 = vst [vmem:[%s12] sm:$0xff] %v4
  %s14 = scalar_lea.vmem %s1, 40
  %15 = vst [vmem:[%s14] sm:$0xff] %v4
  %s16 = scalar_lea.vmem %s1, 48
  %17 = vst [vmem:[%s16] sm:$0xff] %v4
  %s18 = scalar_lea.vmem %s1, 56
  %19 = vst [vmem:[%s18] sm:$0xff] %v4

// kernel: tile.9
$region0: #{tile.9}
  %s0 = inlined_call_operand.vmem [shape: f32[64,2], index: 0, kind: input, shape index: {}]
  %s1 = inlined_call_operand.vmem [shape: f32[1,128], index: 1, kind: output, shape index: {}]
  $region1: #{tile.9} parent=0
    #allocation0 [shape = 'u8[4096]{0}', space=vmem, size = 0x1000, scoped, tag = 'scoped mem for output reshape']
    %v2 = vld [vmem:[%s0] sm:$0x1]
    %vm3 = vcmask 15360
    %4 = vst.msk [vmem:[#allocation0] sm:$0x1] %vm3, %v2
    %s5 = scalar_lea.vmem %s0, 63
    %v6 = vld [vmem:[%s5] sm:$0x1]
    %7 = vrot.lane.b32.xlu0 %v6, 126
    %v8 = vpop.permute.xlu0 %7
    %vm9 = vcmask 1048560
    %10 = vst.msk [vmem:[#allocation0] sm:$0x1] %vm9, %v8
    %s11 = scalar_lea.vmem %s0, 62
    %v12 = vld [vmem:[%s11] sm:$0x1]
    %13 = vrot.lane.b32.xlu0 %v12, 124
    %v14 = vpop.permute.xlu0 %13
    %vm15 = vcmask 1032160
    %16 = vst.msk [vmem:[#allocation0] sm:$0x1] %vm15, %v14
    %s17 = scalar_lea.vmem %s0, 61
    %v18 = vld [vmem:[%s17] sm:$0x1]
    %19 = vrot.lane.b32.xlu0 %v18, 122
    %v20 = vpop.permute.xlu0 %19
    %vm21 = vcmask 1015760
    %22 = vst.msk [vmem:[#allocation0] sm:$0x1] %vm21, %v20
    %s23 = scalar_lea.vmem %s0, 60
    %v24 = vld [vmem:[%s23] sm:$0x1]
    %25 = vrot.lane.b32.xlu0 %v24, 120
    %v26 = vpop.permute.xlu0 %25
    %vm27 = vcmask 999360
    %28 = vst.msk [vmem:[#allocation0] sm:$0x1] %vm27, %v26
    %s29 = scalar_lea.vmem %s0, 59
    %v30 = vld [vmem:[%s29] sm:$0x1]
    %31 = vrot.lane.b32.xlu0 %v30, 118
    %v32 = vpop.permute.xlu0 %31
    %vm33 = vcmask 982960
    %34 = vst.msk [vmem:[#allocation0] sm:$0x1] %vm33, %v32
    %s35 = scalar_lea.vmem %s0, 58
    %v36 = vld [vmem:[%s35] sm:$0x1]
    %37 = vrot.lane.b32.xlu0 %v36, 116
    %v38 = vpop.permute.xlu0 %37
    %vm39 = vcmask 966560
    %40 = vst.msk [vmem:[#allocation0] sm:$0x1] %vm39, %v38
    %s41 = scalar_lea.vmem %s0, 57
    %v42 = vld [vmem:[%s41] sm:$0x1]
    %43 = vrot.lane.b32.xlu0 %v42, 114
    %v44 = vpop.permute.xlu0 %43
    %vm45 = vcmask 950160
    %46 = vst.msk [vmem:[#allocation0] sm:$0x1] %vm45, %v44
    %s47 = scalar_lea.vmem %s0, 56
    %v48 = vld [vmem:[%s47] sm:$0x1]
    %49 = vrot.lane.b32.xlu0 %v48, 112
    %v50 = vpop.permute.xlu0 %49
    %vm51 = vcmask 933760
    %52 = vst.msk [vmem:[#allocation0] sm:$0x1] %vm51, %v50
    %s53 = scalar_lea.vmem %s0, 55
    %v54 = vld [vmem:[%s53] sm:$0x1]
    %55 = vrot.lane.b32.xlu0 %v54, 110
    %v56 = vpop.permute.xlu0 %55
    %vm57 = vcmask 917360
    %58 = vst.msk [vmem:[#allocation0] sm:$0x1] %vm57, %v56
    %s59 = scalar_lea.vmem %s0, 54
    %v60 = vld [vmem:[%s59] sm:$0x1]
    %61 = vrot.lane.b32.xlu0 %v60, 108
    %v62 = vpop.permute.xlu0 %61
    %vm63 = vcmask 900960
    %64 = vst.msk [vmem:[#allocation0] sm:$0x1] %vm63, %v62
    %s65 = scalar_lea.vmem %s0, 53
    %v66 = vld [vmem:[%s65] sm:$0x1]
    %67 = vrot.lane.b32.xlu0 %v66, 106
    %v68 = vpop.permute.xlu0 %67
    %vm69 = vcmask 884560
    %70 = vst.msk [vmem:[#allocation0] sm:$0x1] %vm69, %v68
    %s71 = scalar_lea.vmem %s0, 52
    %v72 = vld [vmem:[%s71] sm:$0x1]
    %73 = vrot.lane.b32.xlu0 %v72, 104
    %v74 = vpop.permute.xlu0 %73
    %vm75 = vcmask 868160
    %76 = vst.msk [vmem:[#allocation0] sm:$0x1] %vm75, %v74
    %s77 = scalar_lea.vmem %s0, 51
    %v78 = vld [vmem:[%s77] sm:$0x1]
    %79 = vrot.lane.b32.xlu0 %v78, 102
    %v80 = vpop.permute.xlu0 %79
    %vm81 = vcmask 851760
    %82 = vst.msk [vmem:[#allocation0] sm:$0x1] %vm81, %v80
    %s83 = scalar_lea.vmem %s0, 50
    %v84 = vld [vmem:[%s83] sm:$0x1]
    %85 = vrot.lane.b32.xlu0 %v84, 100
    %v86 = vpop.permute.xlu0 %85
    %vm87 = vcmask 835360
    %88 = vst.msk [vmem:[#allocation0] sm:$0x1] %vm87, %v86
    %s89 = scalar_lea.vmem %s0, 49
    %v90 = vld [vmem:[%s89] sm:$0x1]
    %91 = vrot.lane.b32.xlu0 %v90, 98
    %v92 = vpop.permute.xlu0 %91
    %vm93 = vcmask 818960
    %94 = vst.msk [vmem:[#allocation0] sm:$0x1] %vm93, %v92
    %s95 = scalar_lea.vmem %s0, 48
    %v96 = vld [vmem:[%s95] sm:$0x1]
    %97 = vrot.lane.b32.xlu0 %v96, 96
    %v98 = vpop.permute.xlu0 %97
    %vm99 = vcmask 802560
    %100 = vst.msk [vmem:[#allocation0] sm:$0x1] %vm99, %v98
    %s101 = scalar_lea.vmem %s0, 47
    %v102 = vld [vmem:[%s101] sm:$0x1]
    %103 = vrot.lane.b32.xlu0 %v102, 94
    %v104 = vpop.permute.xlu0 %103
    %vm105 = vcmask 786160
    %106 = vst.msk [vmem:[#allocation0] sm:$0x1] %vm105, %v104
    %s107 = scalar_lea.vmem %s0, 46
    %v108 = vld [vmem:[%s107] sm:$0x1]
    %109 = vrot.lane.b32.xlu0 %v108, 92
    %v110 = vpop.permute.xlu0 %109
    %vm111 = vcmask 769760
    %112 = vst.msk [vmem:[#allocation0] sm:$0x1] %vm111, %v110
    %s113 = scalar_lea.vmem %s0, 45
    %v114 = vld [vmem:[%s113] sm:$0x1]
    %115 = vrot.lane.b32.xlu0 %v114, 90
    %v116 = vpop.permute.xlu0 %115
    %vm117 = vcmask 753360
    %118 = vst.msk [vmem:[#allocation0] sm:$0x1] %vm117, %v116
    %s119 = scalar_lea.vmem %s0, 44
    %v120 = vld [vmem:[%s119] sm:$0x1]
    %121 = vrot.lane.b32.xlu0 %v120, 88
    %v122 = vpop.permute.xlu0 %121
    %vm123 = vcmask 736960
    %124 = vst.msk [vmem:[#allocation0] sm:$0x1] %vm123, %v122
    %s125 = scalar_lea.vmem %s0, 43
    %v126 = vld [vmem:[%s125] sm:$0x1]
    %127 = vrot.lane.b32.xlu0 %v126, 86
    %v128 = vpop.permute.xlu0 %127
    %vm129 = vcmask 720560
    %130 = vst.msk [vmem:[#allocation0] sm:$0x1] %vm129, %v128
    %s131 = scalar_lea.vmem %s0, 42
    %v132 = vld [vmem:[%s131] sm:$0x1]
    %133 = vrot.lane.b32.xlu0 %v132, 84
    %v134 = vpop.permute.xlu0 %133
    %vm135 = vcmask 704160
    %136 = vst.msk [vmem:[#allocation0] sm:$0x1] %vm135, %v134
    %s137 = scalar_lea.vmem %s0, 41
    %v138 = vld [vmem:[%s137] sm:$0x1]
    %139 = vrot.lane.b32.xlu0 %v138, 82
    %v140 = vpop.permute.xlu0 %139
    %vm141 = vcmask 687760
    %142 = vst.msk [vmem:[#allocation0] sm:$0x1] %vm141, %v140
    %s143 = scalar_lea.vmem %s0, 40
    %v144 = vld [vmem:[%s143] sm:$0x1]
    %145 = vrot.lane.b32.xlu0 %v144, 80
    %v146 = vpop.permute.xlu0 %145
    %vm147 = vcmask 671360
    %148 = vst.msk [vmem:[#allocation0] sm:$0x1] %vm147, %v146
    %s149 = scalar_lea.vmem %s0, 39
    %v150 = vld [vmem:[%s149] sm:$0x1]
    %151 = vrot.lane.b32.xlu0 %v150, 78
    %v152 = vpop.permute.xlu0 %151
    %vm153 = vcmask 654960
    %154 = vst.msk [vmem:[#allocation0] sm:$0x1] %vm153, %v152
    %s155 = scalar_lea.vmem %s0, 38
    %v156 = vld [vmem:[%s155] sm:$0x1]
    %157 = vrot.lane.b32.xlu0 %v156, 76
    %v158 = vpop.permute.xlu0 %157
    %vm159 = vcmask 638560
    %160 = vst.msk [vmem:[#allocation0] sm:$0x1] %vm159, %v158
    %s161 = scalar_lea.vmem %s0, 37
    %v162 = vld [vmem:[%s161] sm:$0x1]
    %163 = vrot.lane.b32.xlu0 %v162, 74
    %v164 = vpop.permute.xlu0 %163
    %vm165 = vcmask 622160
    %166 = vst.msk [vmem:[#allocation0] sm:$0x1] %vm165, %v164
    %s167 = scalar_lea.vmem %s0, 36
    %v168 = vld [vmem:[%s167] sm:$0x1]
    %169 = vrot.lane.b32.xlu0 %v168, 72
    %v170 = vpop.permute.xlu0 %169
    %vm171 = vcmask 605760
    %172 = vst.msk [vmem:[#allocation0] sm:$0x1] %vm171, %v170
    %s173 = scalar_lea.vmem %s0, 35
    %v174 = vld [vmem:[%s173] sm:$0x1]
    %175 = vrot.lane.b32.xlu0 %v174, 70
    %v176 = vpop.permute.xlu0 %175
    %vm177 = vcmask 589360
    %178 = vst.msk [vmem:[#allocation0] sm:$0x1] %vm177, %v176
    %s179 = scalar_lea.vmem %s0, 34
    %v180 = vld [vmem:[%s179] sm:$0x1]
    %181 = vrot.lane.b32.xlu0 %v180, 68
    %v182 = vpop.permute.xlu0 %181
    %vm183 = vcmask 572960
    %184 = vst.msk [vmem:[#allocation0] sm:$0x1] %vm183, %v182
    %s185 = scalar_lea.vmem %s0, 33
    %v186 = vld [vmem:[%s185] sm:$0x1]
    %187 = vrot.lane.b32.xlu0 %v186, 66
    %v188 = vpop.permute.xlu0 %187
    %vm189 = vcmask 556560
    %190 = vst.msk [vmem:[#allocation0] sm:$0x1] %vm189, %v188
    %s191 = scalar_lea.vmem %s0, 32
    %v192 = vld [vmem:[%s191] sm:$0x1]
    %193 = vrot.lane.b32.xlu0 %v192, 64
    %v194 = vpop.permute.xlu0 %193
    %vm195 = vcmask 540160
    %196 = vst.msk [vmem:[#allocation0] sm:$0x1] %vm195, %v194
    %s197 = scalar_lea.vmem %s0, 31
    %v198 = vld [vmem:[%s197] sm:$0x1]
    %199 = vrot.lane.b32.xlu0 %v198, 62
    %v200 = vpop.permute.xlu0 %199
    %vm201 = vcmask 523760
    %202 = vst.msk [vmem:[#allocation0] sm:$0x1] %vm201, %v200
    %s203 = scalar_lea.vmem %s0, 30
    %v204 = vld [vmem:[%s203] sm:$0x1]
    %205 = vrot.lane.b32.xlu0 %v204, 60
    %v206 = vpop.permute.xlu0 %205
    %vm207 = vcmask 507360
    %208 = vst.msk [vmem:[#allocation0] sm:$0x1] %vm207, %v206
    %s209 = scalar_lea.vmem %s0, 29
    %v210 = vld [vmem:[%s209] sm:$0x1]
    %211 = vrot.lane.b32.xlu0 %v210, 58
    %v212 = vpop.permute.xlu0 %211
    %vm213 = vcmask 490960
    %214 = vst.msk [vmem:[#allocation0] sm:$0x1] %vm213, %v212
    %s215 = scalar_lea.vmem %s0, 28
    %v216 = vld [vmem:[%s215] sm:$0x1]
    %217 = vrot.lane.b32.xlu0 %v216, 56
    %v218 = vpop.permute.xlu0 %217
    %vm219 = vcmask 474560
    %220 = vst.msk [vmem:[#allocation0] sm:$0x1] %vm219, %v218
    %s221 = scalar_lea.vmem %s0, 27
    %v222 = vld [vmem:[%s221] sm:$0x1]
    %223 = vrot.lane.b32.xlu0 %v222, 54
    %v224 = vpop.permute.xlu0 %223
    %vm225 = vcmask 458160
    %226 = vst.msk [vmem:[#allocation0] sm:$0x1] %vm225, %v224
    %s227 = scalar_lea.vmem %s0, 26
    %v228 = vld [vmem:[%s227] sm:$0x1]
    %229 = vrot.lane.b32.xlu0 %v228, 52
    %v230 = vpop.permute.xlu0 %229
    %vm231 = vcmask 441760
    %232 = vst.msk [vmem:[#allocation0] sm:$0x1] %vm231, %v230
    %s233 = scalar_lea.vmem %s0, 25
    %v234 = vld [vmem:[%s233] sm:$0x1]
    %235 = vrot.lane.b32.xlu0 %v234, 50
    %v236 = vpop.permute.xlu0 %235
    %vm237 = vcmask 425360
    %238 = vst.msk [vmem:[#allocation0] sm:$0x1] %vm237, %v236
    %s239 = scalar_lea.vmem %s0, 24
    %v240 = vld [vmem:[%s239] sm:$0x1]
    %241 = vrot.lane.b32.xlu0 %v240, 48
    %v242 = vpop.permute.xlu0 %241
    %vm243 = vcmask 408960
    %244 = vst.msk [vmem:[#allocation0] sm:$0x1] %vm243, %v242
    %s245 = scalar_lea.vmem %s0, 23
    %v246 = vld [vmem:[%s245] sm:$0x1]
    %247 = vrot.lane.b32.xlu0 %v246, 46
    %v248 = vpop.permute.xlu0 %247
    %vm249 = vcmask 392560
    %250 = vst.msk [vmem:[#allocation0] sm:$0x1] %vm249, %v248
    %s251 = scalar_lea.vmem %s0, 22
    %v252 = vld [vmem:[%s251] sm:$0x1]
    %253 = vrot.lane.b32.xlu0 %v252, 44
    %v254 = vpop.permute.xlu0 %253
    %vm255 = vcmask 376160
    %256 = vst.msk [vmem:[#allocation0] sm:$0x1] %vm255, %v254
    %s257 = scalar_lea.vmem %s0, 21
    %v258 = vld [vmem:[%s257] sm:$0x1]
    %259 = vrot.lane.b32.xlu0 %v258, 42
    %v260 = vpop.permute.xlu0 %259
    %vm261 = vcmask 359760
    %262 = vst.msk [vmem:[#allocation0] sm:$0x1] %vm261, %v260
    %s263 = scalar_lea.vmem %s0, 20
    %v264 = vld [vmem:[%s263] sm:$0x1]
    %265 = vrot.lane.b32.xlu0 %v264, 40
    %v266 = vpop.permute.xlu0 %265
    %vm267 = vcmask 343360
    %268 = vst.msk [vmem:[#allocation0] sm:$0x1] %vm267, %v266
    %s269 = scalar_lea.vmem %s0, 19
    %v270 = vld [vmem:[%s269] sm:$0x1]
    %271 = vrot.lane.b32.xlu0 %v270, 38
    %v272 = vpop.permute.xlu0 %271
    %vm273 = vcmask 326960
    %274 = vst.msk [vmem:[#allocation0] sm:$0x1] %vm273, %v272
    %s275 = scalar_lea.vmem %s0, 18
    %v276 = vld [vmem:[%s275] sm:$0x1]
    %277 = vrot.lane.b32.xlu0 %v276, 36
    %v278 = vpop.permute.xlu0 %277
    %vm279 = vcmask 310560
    %280 = vst.msk [vmem:[#allocation0] sm:$0x1] %vm279, %v278
    %s281 = scalar_lea.vmem %s0, 17
    %v282 = vld [vmem:[%s281] sm:$0x1]
    %283 = vrot.lane.b32.xlu0 %v282, 34
    %v284 = vpop.permute.xlu0 %283
    %vm285 = vcmask 294160
    %286 = vst.msk [vmem:[#allocation0] sm:$0x1] %vm285, %v284
    %s287 = scalar_lea.vmem %s0, 16
    %v288 = vld [vmem:[%s287] sm:$0x1]
    %289 = vrot.lane.b32.xlu0 %v288, 32
    %v290 = vpop.permute.xlu0 %289
    %vm291 = vcmask 277760
    %292 = vst.msk [vmem:[#allocation0] sm:$0x1] %vm291, %v290
    %s293 = scalar_lea.vmem %s0, 15
    %v294 = vld [vmem:[%s293] sm:$0x1]
    %295 = vrot.lane.b32.xlu0 %v294, 30
    %v296 = vpop.permute.xlu0 %295
    %vm297 = vcmask 261360
    %298 = vst.msk [vmem:[#allocation0] sm:$0x1] %vm297, %v296
    %s299 = scalar_lea.vmem %s0, 14
    %v300 = vld [vmem:[%s299] sm:$0x1]
    %301 = vrot.lane.b32.xlu0 %v300, 28
    %v302 = vpop.permute.xlu0 %301
    %vm303 = vcmask 244960
    %304 = vst.msk [vmem:[#allocation0] sm:$0x1] %vm303, %v302
    %s305 = scalar_lea.vmem %s0, 13
    %v306 = vld [vmem:[%s305] sm:$0x1]
    %307 = vrot.lane.b32.xlu0 %v306, 26
    %v308 = vpop.permute.xlu0 %307
    %vm309 = vcmask 228560
    %310 = vst.msk [vmem:[#allocation0] sm:$0x1] %vm309, %v308
    %s311 = scalar_lea.vmem %s0, 12
    %v312 = vld [vmem:[%s311] sm:$0x1]
    %313 = vrot.lane.b32.xlu0 %v312, 24
    %v314 = vpop.permute.xlu0 %313
    %vm315 = vcmask 212160
    %316 = vst.msk [vmem:[#allocation0] sm:$0x1] %vm315, %v314
    %s317 = scalar_lea.vmem %s0, 11
    %v318 = vld [vmem:[%s317] sm:$0x1]
    %319 = vrot.lane.b32.xlu0 %v318, 22
    %v320 = vpop.permute.xlu0 %319
    %vm321 = vcmask 195760
    %322 = vst.msk [vmem:[#allocation0] sm:$0x1] %vm321, %v320
    %s323 = scalar_lea.vmem %s0, 10
    %v324 = vld [vmem:[%s323] sm:$0x1]
    %325 = vrot.lane.b32.xlu0 %v324, 20
    %v326 = vpop.permute.xlu0 %325
    %vm327 = vcmask 179360
    %328 = vst.msk [vmem:[#allocation0] sm:$0x1] %vm327, %v326
    %s329 = scalar_lea.vmem %s0, 9
    %v330 = vld [vmem:[%s329] sm:$0x1]
    %331 = vrot.lane.b32.xlu0 %v330, 18
    %v332 = vpop.permute.xlu0 %331
    %vm333 = vcmask 162960
    %334 = vst.msk [vmem:[#allocation0] sm:$0x1] %vm333, %v332
    %s335 = scalar_lea.vmem %s0, 8
    %v336 = vld [vmem:[%s335] sm:$0x1]
    %337 = vrot.lane.b32.xlu0 %v336, 16
    %v338 = vpop.permute.xlu0 %337
    %vm339 = vcmask 146560
    %340 = vst.msk [vmem:[#allocation0] sm:$0x1] %vm339, %v338
    %s341 = scalar_lea.vmem %s0, 7
    %v342 = vld [vmem:[%s341] sm:$0x1]
    %343 = vrot.lane.b32.xlu0 %v342, 14
    %v344 = vpop.permute.xlu0 %343
    %vm345 = vcmask 130160
    %346 = vst.msk [vmem:[#allocation0] sm:$0x1] %vm345, %v344
    %s347 = scalar_lea.vmem %s0, 6
    %v348 = vld [vmem:[%s347] sm:$0x1]
    %349 = vrot.lane.b32.xlu0 %v348, 12
    %v350 = vpop.permute.xlu0 %349
    %vm351 = vcmask 113760
    %352 = vst.msk [vmem:[#allocation0] sm:$0x1] %vm351, %v350
    %s353 = scalar_lea.vmem %s0, 5
    %v354 = vld [vmem:[%s353] sm:$0x1]
    %355 = vrot.lane.b32.xlu0 %v354, 10
    %v356 = vpop.permute.xlu0 %355
    %vm357 = vcmask 97360
    %358 = vst.msk [vmem:[#allocation0] sm:$0x1] %vm357, %v356
    %s359 = scalar_lea.vmem %s0, 4
    %v360 = vld [vmem:[%s359] sm:$0x1]
    %361 = vrot.lane.b32.xlu0 %v360, 8
    %v362 = vpop.permute.xlu0 %361
    %vm363 = vcmask 80960
    %364 = vst.msk [vmem:[#allocation0] sm:$0x1] %vm363, %v362
    %s365 = scalar_lea.vmem %s0, 3
    %v366 = vld [vmem:[%s365] sm:$0x1]
    %367 = vrot.lane.b32.xlu0 %v366, 6
    %v368 = vpop.permute.xlu0 %367
    %vm369 = vcmask 64560
    %370 = vst.msk [vmem:[#allocation0] sm:$0x1] %vm369, %v368
    %s371 = scalar_lea.vmem %s0, 2
    %v372 = vld [vmem:[%s371] sm:$0x1]
    %373 = vrot.lane.b32.xlu0 %v372, 4
    %v374 = vpop.permute.xlu0 %373
    %vm375 = vcmask 48160
    %376 = vst.msk [vmem:[#allocation0] sm:$0x1] %vm375, %v374
    %s377 = scalar_lea.vmem %s0, 1
    %v378 = vld [vmem:[%s377] sm:$0x1]
    %379 = vrot.lane.b32.xlu0 %v378, 2
    %v380 = vpop.permute.xlu0 %379
    %vm381 = vcmask 31760
    %382 = vst.msk [vmem:[#allocation0] sm:$0x1] %vm381, %v380
    %s384 = ssub.s32 2, 1
    %v385 = vld [vmem:[#allocation0] sm:%s384]
    %s387 = ssub.s32 2, 1
    %388 = vst [vmem:[%s1] sm:%s387] %v385

// kernel: net_forward.1
$region0: #{net_forward.1}
  #allocation0 [shape = 'u32[]', space=smem, size = 0x4, offset = 0x4, fixed_abs, tag = 'smem constant byte address 0x4 - core index']
  #allocation1 [shape = 'u32[72,128]{1,0:T(1,128)}', space=vmem, size = 0x9000, scoped, tag = 'internal scratch']
  %s0 = inlined_call_operand.vmem [shape: f32[8,1664], index: 0, kind: input, shape index: {}]
  %s1 = inlined_call_operand.vmem [shape: f32[1664,128], index: 1, kind: input, shape index: {}]
  %s2 = inlined_call_operand.vmem [shape: f32[1,128], index: 2, kind: input, shape index: {}]
  %s3 = inlined_call_operand.vmem [shape: f32[8,128], index: 3, kind: output, shape index: {}]
  %s4 = sld [smem:[#allocation0]]
  $region22: #{net_forward.1} parent=0
    _
  %s6 = ssub.s32 1, %s4
  %s7 = scalar_select 0, %s6, %s4
  // Predicated region
  $region2: #{net_forward.1} parent=0 // pred_check
    _
  $region3: #{net_forward.1} parent=0 // pred_check_branch
    %9 = sbr.rel (0) target = $region5
  $region4: #{net_forward.1} parent=0 // pred_region
    _
  $region5: #{net_forward.1} parent=0 // pred_fallthru
    _
  // Predicated region
  $region6: #{net_forward.1} parent=0 // pred_check
    _
  $region7: #{net_forward.1} parent=0 // pred_check_branch
    %11 = sbr.rel (0) target = $region9
  $region8: #{net_forward.1} parent=0 // pred_region
    _
  $region9: #{net_forward.1} parent=0 // pred_fallthru
    _
  // Predicated region
  $region10: #{net_forward.1} parent=0 // pred_check
    _
  $region11: #{net_forward.1} parent=0 // pred_check_branch
    %13 = sbr.rel (0) target = $region13
  $region12: #{net_forward.1} parent=0 // pred_region
    _
  $region13: #{net_forward.1} parent=0 // pred_fallthru
    _
  %v14 = vld [vmem:[%s0] sm:$0xff]
  %v15 = vld [vmem:[%s0 + $0x8] sm:$0xff]
  %v16 = vld [vmem:[%s0 + $0x10] sm:$0xff]
  %v17 = vld [vmem:[%s0 + $0x18] sm:$0xff]
  %v18 = vld [vmem:[%s0 + $0x20] sm:$0xff]
  %v19 = vld [vmem:[%s0 + $0x28] sm:$0xff]
  %v20 = vld [vmem:[%s0 + $0x30] sm:$0xff]
  %v21 = vld [vmem:[%s0 + $0x38] sm:$0xff]
  %v22 = vld [vmem:[%s0 + $0x40] sm:$0xff]
  %v23 = vld [vmem:[%s0 + $0x48] sm:$0xff]
  %v24 = vld [vmem:[%s0 + $0x50] sm:$0xff]
  %v25 = vld [vmem:[%s0 + $0x58] sm:$0xff]
  %v26 = vld [vmem:[%s0 + $0x60] sm:$0xff]
  %v27 = vld [vmem:[%s1] sm:$0xff]
  %v28 = vld [vmem:[%s1 + $0x8] sm:$0xff]
  %v29 = vld [vmem:[%s1 + $0x10] sm:$0xff]
  %v30 = vld [vmem:[%s1 + $0x18] sm:$0xff]
  %v31 = vld [vmem:[%s1 + $0x20] sm:$0xff]
  %v32 = vld [vmem:[%s1 + $0x28] sm:$0xff]
  %v33 = vld [vmem:[%s1 + $0x30] sm:$0xff]
  %v34 = vld [vmem:[%s1 + $0x38] sm:$0xff]
  %v35 = vld [vmem:[%s1 + $0x40] sm:$0xff]
  %v36 = vld [vmem:[%s1 + $0x48] sm:$0xff]
  %v37 = vld [vmem:[%s1 + $0x50] sm:$0xff]
  %v38 = vld [vmem:[%s1 + $0x58] sm:$0xff]
  %v39 = vld [vmem:[%s1 + $0x60] sm:$0xff]
  %v40 = vld [vmem:[%s1 + $0x68] sm:$0xff]
  %v41 = vld [vmem:[%s1 + $0x70] sm:$0xff]
  %v42 = vld [vmem:[%s1 + $0x78] sm:$0xff]
  %v43 = vld [vmem:[%s1 + $0x80] sm:$0xff]
  %v44 = vld [vmem:[%s1 + $0x88] sm:$0xff]
  %v45 = vld [vmem:[%s1 + $0x90] sm:$0xff]
  %v46 = vld [vmem:[%s1 + $0x98] sm:$0xff]
  %v47 = vld [vmem:[%s1 + $0xa0] sm:$0xff]
  %v48 = vld [vmem:[%s1 + $0xa8] sm:$0xff]
  %v49 = vld [vmem:[%s1 + $0xb0] sm:$0xff]
  %v50 = vld [vmem:[%s1 + $0xb8] sm:$0xff]
  %v51 = vld [vmem:[%s1 + $0xc0] sm:$0xff]
  %v52 = vld [vmem:[%s1 + $0xc8] sm:$0xff]
  %v53 = vld [vmem:[%s1 + $0xd0] sm:$0xff]
  %v54 = vld [vmem:[%s1 + $0xd8] sm:$0xff]
  %v55 = vld [vmem:[%s1 + $0xe0] sm:$0xff]
  %v56 = vld [vmem:[%s1 + $0xe8] sm:$0xff]
  %v57 = vld [vmem:[%s1 + $0xf0] sm:$0xff]
  %v58 = vld [vmem:[%s1 + $0xf8] sm:$0xff]
  %v59 = vld [vmem:[%s1 + $0x100] sm:$0xff]
  %v60 = vld [vmem:[%s1 + $0x108] sm:$0xff]
  %v61 = vld [vmem:[%s1 + $0x110] sm:$0xff]
  %v62 = vld [vmem:[%s1 + $0x118] sm:$0xff]
  %v63 = vld [vmem:[%s1 + $0x120] sm:$0xff]
  %v64 = vld [vmem:[%s1 + $0x128] sm:$0xff]
  %v65 = vld [vmem:[%s1 + $0x130] sm:$0xff]
  %v66 = vld [vmem:[%s1 + $0x138] sm:$0xff]
  %v67 = vld [vmem:[%s1 + $0x140] sm:$0xff]
  %v68 = vld [vmem:[%s1 + $0x148] sm:$0xff]
  %v69 = vld [vmem:[%s1 + $0x150] sm:$0xff]
  %v70 = vld [vmem:[%s1 + $0x158] sm:$0xff]
  %v71 = vld [vmem:[%s1 + $0x160] sm:$0xff]
  %v72 = vld [vmem:[%s1 + $0x168] sm:$0xff]
  %v73 = vld [vmem:[%s1 + $0x170] sm:$0xff]
  %v74 = vld [vmem:[%s1 + $0x178] sm:$0xff]
  %v75 = vld [vmem:[%s1 + $0x180] sm:$0xff]
  %v76 = vld [vmem:[%s1 + $0x188] sm:$0xff]
  %v77 = vld [vmem:[%s1 + $0x190] sm:$0xff]
  %v78 = vld [vmem:[%s1 + $0x198] sm:$0xff]
  %v79 = vld [vmem:[%s1 + $0x1a0] sm:$0xff]
  %v80 = vld [vmem:[%s1 + $0x1a8] sm:$0xff]
  %v81 = vld [vmem:[%s1 + $0x1b0] sm:$0xff]
  %v82 = vld [vmem:[%s1 + $0x1b8] sm:$0xff]
  %v83 = vld [vmem:[%s1 + $0x1c0] sm:$0xff]
  %v84 = vld [vmem:[%s1 + $0x1c8] sm:$0xff]
  %v85 = vld [vmem:[%s1 + $0x1d0] sm:$0xff]
  %v86 = vld [vmem:[%s1 + $0x1d8] sm:$0xff]
  %v87 = vld [vmem:[%s1 + $0x1e0] sm:$0xff]
  %v88 = vld [vmem:[%s1 + $0x1e8] sm:$0xff]
  %v89 = vld [vmem:[%s1 + $0x1f0] sm:$0xff]
  %v90 = vld [vmem:[%s1 + $0x1f8] sm:$0xff]
  %v91 = vld [vmem:[%s1 + $0x200] sm:$0xff]
  %v92 = vld [vmem:[%s1 + $0x208] sm:$0xff]
  %v93 = vld [vmem:[%s1 + $0x210] sm:$0xff]
  %v94 = vld [vmem:[%s1 + $0x218] sm:$0xff]
  %v95 = vld [vmem:[%s1 + $0x220] sm:$0xff]
  %v96 = vld [vmem:[%s1 + $0x228] sm:$0xff]
  %v97 = vld [vmem:[%s1 + $0x230] sm:$0xff]
  %v98 = vld [vmem:[%s1 + $0x238] sm:$0xff]
  %v99 = vld [vmem:[%s1 + $0x240] sm:$0xff]
  %v100 = vld [vmem:[%s1 + $0x248] sm:$0xff]
  %v101 = vld [vmem:[%s1 + $0x250] sm:$0xff]
  %v102 = vld [vmem:[%s1 + $0x258] sm:$0xff]
  %v103 = vld [vmem:[%s1 + $0x260] sm:$0xff]
  %v104 = vld [vmem:[%s1 + $0x268] sm:$0xff]
  %v105 = vld [vmem:[%s1 + $0x270] sm:$0xff]
  %v106 = vld [vmem:[%s1 + $0x278] sm:$0xff]
  %v107 = vld [vmem:[%s1 + $0x280] sm:$0xff]
  %v108 = vld [vmem:[%s1 + $0x288] sm:$0xff]
  %v109 = vld [vmem:[%s1 + $0x290] sm:$0xff]
  %v110 = vld [vmem:[%s1 + $0x298] sm:$0xff]
  %v111 = vld [vmem:[%s1 + $0x2a0] sm:$0xff]
  %v112 = vld [vmem:[%s1 + $0x2a8] sm:$0xff]
  %v113 = vld [vmem:[%s1 + $0x2b0] sm:$0xff]
  %v114 = vld [vmem:[%s1 + $0x2b8] sm:$0xff]
  %v115 = vld [vmem:[%s1 + $0x2c0] sm:$0xff]
  %v116 = vld [vmem:[%s1 + $0x2c8] sm:$0xff]
  %v117 = vld [vmem:[%s1 + $0x2d0] sm:$0xff]
  %v118 = vld [vmem:[%s1 + $0x2d8] sm:$0xff]
  %v119 = vld [vmem:[%s1 + $0x2e0] sm:$0xff]
  %v120 = vld [vmem:[%s1 + $0x2e8] sm:$0xff]
  %v121 = vld [vmem:[%s1 + $0x2f0] sm:$0xff]
  %v122 = vld [vmem:[%s1 + $0x2f8] sm:$0xff]
  %v123 = vld [vmem:[%s1 + $0x300] sm:$0xff]
  %v124 = vld [vmem:[%s1 + $0x308] sm:$0xff]
  %v125 = vld [vmem:[%s1 + $0x310] sm:$0xff]
  %v126 = vld [vmem:[%s1 + $0x318] sm:$0xff]
  %v127 = vld [vmem:[%s1 + $0x320] sm:$0xff]
  %v128 = vld [vmem:[%s1 + $0x328] sm:$0xff]
  %v129 = vld [vmem:[%s1 + $0x330] sm:$0xff]
  %v130 = vld [vmem:[%s1 + $0x338] sm:$0xff]
  %v131 = vld [vmem:[%s1 + $0x340] sm:$0xff]
  %v132 = vld [vmem:[%s1 + $0x348] sm:$0xff]
  %v133 = vld [vmem:[%s1 + $0x350] sm:$0xff]
  %v134 = vld [vmem:[%s1 + $0x358] sm:$0xff]
  %v135 = vld [vmem:[%s1 + $0x360] sm:$0xff]
  %v136 = vld [vmem:[%s1 + $0x368] sm:$0xff]
  %v137 = vld [vmem:[%s1 + $0x370] sm:$0xff]
  %v138 = vld [vmem:[%s1 + $0x378] sm:$0xff]
  %v139 = vld [vmem:[%s1 + $0x380] sm:$0xff]
  %v140 = vld [vmem:[%s1 + $0x388] sm:$0xff]
  %v141 = vld [vmem:[%s1 + $0x390] sm:$0xff]
  %v142 = vld [vmem:[%s1 + $0x398] sm:$0xff]
  %v143 = vld [vmem:[%s1 + $0x3a0] sm:$0xff]
  %v144 = vld [vmem:[%s1 + $0x3a8] sm:$0xff]
  %v145 = vld [vmem:[%s1 + $0x3b0] sm:$0xff]
  %v146 = vld [vmem:[%s1 + $0x3b8] sm:$0xff]
  %v147 = vld [vmem:[%s1 + $0x3c0] sm:$0xff]
  %v148 = vld [vmem:[%s1 + $0x3c8] sm:$0xff]
  %v149 = vld [vmem:[%s1 + $0x3d0] sm:$0xff]
  %v150 = vld [vmem:[%s1 + $0x3d8] sm:$0xff]
  %v151 = vld [vmem:[%s1 + $0x3e0] sm:$0xff]
  %v152 = vld [vmem:[%s1 + $0x3e8] sm:$0xff]
  %v153 = vld [vmem:[%s1 + $0x3f0] sm:$0xff]
  %v154 = vld [vmem:[%s1 + $0x3f8] sm:$0xff]
  %v155 = vld [vmem:[%s1 + $0x400] sm:$0xff]
  %v156 = vld [vmem:[%s1 + $0x408] sm:$0xff]
  %v157 = vld [vmem:[%s1 + $0x410] sm:$0xff]
  %v158 = vld [vmem:[%s1 + $0x418] sm:$0xff]
  %v159 = vld [vmem:[%s1 + $0x420] sm:$0xff]
  %v160 = vld [vmem:[%s1 + $0x428] sm:$0xff]
  %v161 = vld [vmem:[%s1 + $0x430] sm:$0xff]
  %v162 = vld [vmem:[%s1 + $0x438] sm:$0xff]
  %v163 = vld [vmem:[%s1 + $0x440] sm:$0xff]
  %v164 = vld [vmem:[%s1 + $0x448] sm:$0xff]
  %v165 = vld [vmem:[%s1 + $0x450] sm:$0xff]
  %v166 = vld [vmem:[%s1 + $0x458] sm:$0xff]
  %v167 = vld [vmem:[%s1 + $0x460] sm:$0xff]
  %v168 = vld [vmem:[%s1 + $0x468] sm:$0xff]
  %v169 = vld [vmem:[%s1 + $0x470] sm:$0xff]
  %v170 = vld [vmem:[%s1 + $0x478] sm:$0xff]
  %v171 = vld [vmem:[%s1 + $0x480] sm:$0xff]
  %v172 = vld [vmem:[%s1 + $0x488] sm:$0xff]
  %v173 = vld [vmem:[%s1 + $0x490] sm:$0xff]
  %v174 = vld [vmem:[%s1 + $0x498] sm:$0xff]
  %v175 = vld [vmem:[%s1 + $0x4a0] sm:$0xff]
  %v176 = vld [vmem:[%s1 + $0x4a8] sm:$0xff]
  %v177 = vld [vmem:[%s1 + $0x4b0] sm:$0xff]
  %v178 = vld [vmem:[%s1 + $0x4b8] sm:$0xff]
  %v179 = vld [vmem:[%s1 + $0x4c0] sm:$0xff]
  %v180 = vld [vmem:[%s1 + $0x4c8] sm:$0xff]
  %v181 = vld [vmem:[%s1 + $0x4d0] sm:$0xff]
  %v182 = vld [vmem:[%s1 + $0x4d8] sm:$0xff]
  %v183 = vld [vmem:[%s1 + $0x4e0] sm:$0xff]
  %v184 = vld [vmem:[%s1 + $0x4e8] sm:$0xff]
  %v185 = vld [vmem:[%s1 + $0x4f0] sm:$0xff]
  %v186 = vld [vmem:[%s1 + $0x4f8] sm:$0xff]
  %v187 = vld [vmem:[%s1 + $0x500] sm:$0xff]
  %v188 = vld [vmem:[%s1 + $0x508] sm:$0xff]
  %v189 = vld [vmem:[%s1 + $0x510] sm:$0xff]
  %v190 = vld [vmem:[%s1 + $0x518] sm:$0xff]
  %v191 = vld [vmem:[%s1 + $0x520] sm:$0xff]
  %v192 = vld [vmem:[%s1 + $0x528] sm:$0xff]
  %v193 = vld [vmem:[%s1 + $0x530] sm:$0xff]
  %v194 = vld [vmem:[%s1 + $0x538] sm:$0xff]
  %v195 = vld [vmem:[%s1 + $0x540] sm:$0xff]
  %v196 = vld [vmem:[%s1 + $0x548] sm:$0xff]
  %v197 = vld [vmem:[%s1 + $0x550] sm:$0xff]
  %v198 = vld [vmem:[%s1 + $0x558] sm:$0xff]
  %v199 = vld [vmem:[%s1 + $0x560] sm:$0xff]
  %v200 = vld [vmem:[%s1 + $0x568] sm:$0xff]
  %v201 = vld [vmem:[%s1 + $0x570] sm:$0xff]
  %v202 = vld [vmem:[%s1 + $0x578] sm:$0xff]
  %v203 = vld [vmem:[%s1 + $0x580] sm:$0xff]
  %v204 = vld [vmem:[%s1 + $0x588] sm:$0xff]
  %v205 = vld [vmem:[%s1 + $0x590] sm:$0xff]
  %v206 = vld [vmem:[%s1 + $0x598] sm:$0xff]
  %v207 = vld [vmem:[%s1 + $0x5a0] sm:$0xff]
  %v208 = vld [vmem:[%s1 + $0x5a8] sm:$0xff]
  %v209 = vld [vmem:[%s1 + $0x5b0] sm:$0xff]
  %v210 = vld [vmem:[%s1 + $0x5b8] sm:$0xff]
  %v211 = vld [vmem:[%s1 + $0x5c0] sm:$0xff]
  %v212 = vld [vmem:[%s1 + $0x5c8] sm:$0xff]
  %v213 = vld [vmem:[%s1 + $0x5d0] sm:$0xff]
  %v214 = vld [vmem:[%s1 + $0x5d8] sm:$0xff]
  %v215 = vld [vmem:[%s1 + $0x5e0] sm:$0xff]
  %v216 = vld [vmem:[%s1 + $0x5e8] sm:$0xff]
  %v217 = vld [vmem:[%s1 + $0x5f0] sm:$0xff]
  %v218 = vld [vmem:[%s1 + $0x5f8] sm:$0xff]
  %v219 = vld [vmem:[%s1 + $0x600] sm:$0xff]
  %v220 = vld [vmem:[%s1 + $0x608] sm:$0xff]
  %v221 = vld [vmem:[%s1 + $0x610] sm:$0xff]
  %v222 = vld [vmem:[%s1 + $0x618] sm:$0xff]
  %v223 = vld [vmem:[%s1 + $0x620] sm:$0xff]
  %v224 = vld [vmem:[%s1 + $0x628] sm:$0xff]
  %v225 = vld [vmem:[%s1 + $0x630] sm:$0xff]
  %v226 = vld [vmem:[%s1 + $0x638] sm:$0xff]
  %v227 = vld [vmem:[%s1 + $0x640] sm:$0xff]
  %v228 = vld [vmem:[%s1 + $0x648] sm:$0xff]
  %v229 = vld [vmem:[%s1 + $0x650] sm:$0xff]
  %v230 = vld [vmem:[%s1 + $0x658] sm:$0xff]
  %v231 = vld [vmem:[%s1 + $0x660] sm:$0xff]
  %v232 = vld [vmem:[%s1 + $0x668] sm:$0xff]
  %v233 = vld [vmem:[%s1 + $0x670] sm:$0xff]
  %v234 = vld [vmem:[%s1 + $0x678] sm:$0xff]
  %v235 = vld [vmem:[%s2] sm:$0x1]
  %v237 = vperm.slane %v235, 0
  %239 = vmatpush.msra.mxu0 %v42
  %240 = vmatpush.msra.mxu0 %v41
  %241 = vmatpush.msra.mxu0 %v40
  %242 = vmatpush.msra.mxu0 %v39
  %243 = vmatpush.msra.mxu0 %v38
  %244 = vmatpush.msra.mxu0 %v37
  %245 = vmatpush.msra.mxu0 %v36
  %246 = vmatpush.msra.mxu0 %v35
  %247 = vmatpush.msra.mxu0 %v34
  %248 = vmatpush.msra.mxu0 %v33
  %249 = vmatpush.msra.mxu0 %v32
  %250 = vmatpush.msra.mxu0 %v31
  %251 = vmatpush.msra.mxu0 %v30
  %252 = vmatpush.msra.mxu0 %v29
  %253 = vmatpush.msra.mxu0 %v28
  %254 = vmatpush.msra.mxu0 %v27
  %255 = vmatmul.f32.gmra.mxu0 %v14
  %v256 = vpop.f32.mrf.mxu0
  %v257 = vadd.f32 %v237, %v256
  %258 = vdwg.mxu0
  %259 = vmatpush.msra.mxu0 %v58
  %260 = vmatpush.msra.mxu0 %v57
  %261 = vmatpush.msra.mxu0 %v56
  %262 = vmatpush.msra.mxu0 %v55
  %263 = vmatpush.msra.mxu0 %v54
  %264 = vmatpush.msra.mxu0 %v53
  %265 = vmatpush.msra.mxu0 %v52
  %266 = vmatpush.msra.mxu0 %v51
  %267 = vmatpush.msra.mxu0 %v50
  %268 = vmatpush.msra.mxu0 %v49
  %269 = vmatpush.msra.mxu0 %v48
  %270 = vmatpush.msra.mxu0 %v47
  %271 = vmatpush.msra.mxu0 %v46
  %272 = vmatpush.msra.mxu0 %v45
  %273 = vmatpush.msra.mxu0 %v44
  %274 = vmatpush.msra.mxu0 %v43
  %275 = vmatmul.f32.gmra.mxu0 %v15
  %v276 = vpop.f32.mrf.mxu0
  %v277 = vadd.f32 %v257, %v276
  %278 = vdwg.mxu0
  %279 = vmatpush.msra.mxu0 %v74
  %280 = vmatpush.msra.mxu0 %v73
  %281 = vmatpush.msra.mxu0 %v72
  %282 = vmatpush.msra.mxu0 %v71
  %283 = vmatpush.msra.mxu0 %v70
  %284 = vmatpush.msra.mxu0 %v69
  %285 = vmatpush.msra.mxu0 %v68
  %286 = vmatpush.msra.mxu0 %v67
  %287 = vmatpush.msra.mxu0 %v66
  %288 = vmatpush.msra.mxu0 %v65
  %289 = vmatpush.msra.mxu0 %v64
  %290 = vmatpush.msra.mxu0 %v63
  %291 = vmatpush.msra.mxu0 %v62
  %292 = vmatpush.msra.mxu0 %v61
  %293 = vmatpush.msra.mxu0 %v60
  %294 = vmatpush.msra.mxu0 %v59
  %295 = vmatmul.f32.gmra.mxu0 %v16
  %v296 = vpop.f32.mrf.mxu0
  %v297 = vadd.f32 %v277, %v296
  %298 = vdwg.mxu0
  %299 = vmatpush.msra.mxu0 %v90
  %300 = vmatpush.msra.mxu0 %v89
  %301 = vmatpush.msra.mxu0 %v88
  %302 = vmatpush.msra.mxu0 %v87
  %303 = vmatpush.msra.mxu0 %v86
  %304 = vmatpush.msra.mxu0 %v85
  %305 = vmatpush.msra.mxu0 %v84
  %306 = vmatpush.msra.mxu0 %v83
  %307 = vmatpush.msra.mxu0 %v82
  %308 = vmatpush.msra.mxu0 %v81
  %309 = vmatpush.msra.mxu0 %v80
  %310 = vmatpush.msra.mxu0 %v79
  %311 = vmatpush.msra.mxu0 %v78
  %312 = vmatpush.msra.mxu0 %v77
  %313 = vmatpush.msra.mxu0 %v76
  %314 = vmatpush.msra.mxu0 %v75
  %315 = vmatmul.f32.gmra.mxu0 %v17
  %v316 = vpop.f32.mrf.mxu0
  %v317 = vadd.f32 %v297, %v316
  %318 = vdwg.mxu0
  %319 = vmatpush.msra.mxu0 %v106
  %320 = vmatpush.msra.mxu0 %v105
  %321 = vmatpush.msra.mxu0 %v104
  %322 = vmatpush.msra.mxu0 %v103
  %323 = vmatpush.msra.mxu0 %v102
  %324 = vmatpush.msra.mxu0 %v101
  %325 = vmatpush.msra.mxu0 %v100
  %326 = vmatpush.msra.mxu0 %v99
  %327 = vmatpush.msra.mxu0 %v98
  %328 = vmatpush.msra.mxu0 %v97
  %329 = vmatpush.msra.mxu0 %v96
  %330 = vmatpush.msra.mxu0 %v95
  %331 = vmatpush.msra.mxu0 %v94
  %332 = vmatpush.msra.mxu0 %v93
  %333 = vmatpush.msra.mxu0 %v92
  %334 = vmatpush.msra.mxu0 %v91
  %335 = vmatmul.f32.gmra.mxu0 %v18
  %v336 = vpop.f32.mrf.mxu0
  %v337 = vadd.f32 %v317, %v336
  %338 = vdwg.mxu0
  %339 = vmatpush.msra.mxu0 %v122
  %340 = vmatpush.msra.mxu0 %v121
  %341 = vmatpush.msra.mxu0 %v120
  %342 = vmatpush.msra.mxu0 %v119
  %343 = vmatpush.msra.mxu0 %v118
  %344 = vmatpush.msra.mxu0 %v117
  %345 = vmatpush.msra.mxu0 %v116
  %346 = vmatpush.msra.mxu0 %v115
  %347 = vmatpush.msra.mxu0 %v114
  %348 = vmatpush.msra.mxu0 %v113
  %349 = vmatpush.msra.mxu0 %v112
  %350 = vmatpush.msra.mxu0 %v111
  %351 = vmatpush.msra.mxu0 %v110
  %352 = vmatpush.msra.mxu0 %v109
  %353 = vmatpush.msra.mxu0 %v108
  %354 = vmatpush.msra.mxu0 %v107
  %355 = vmatmul.f32.gmra.mxu0 %v19
  %v356 = vpop.f32.mrf.mxu0
  %v357 = vadd.f32 %v337, %v356
  %358 = vdwg.mxu0
  %359 = vmatpush.msra.mxu0 %v138
  %360 = vmatpush.msra.mxu0 %v137
  %361 = vmatpush.msra.mxu0 %v136
  %362 = vmatpush.msra.mxu0 %v135
  %363 = vmatpush.msra.mxu0 %v134
  %364 = vmatpush.msra.mxu0 %v133
  %365 = vmatpush.msra.mxu0 %v132
  %366 = vmatpush.msra.mxu0 %v131
  %367 = vmatpush.msra.mxu0 %v130
  %368 = vmatpush.msra.mxu0 %v129
  %369 = vmatpush.msra.mxu0 %v128
  %370 = vmatpush.msra.mxu0 %v127
  %371 = vmatpush.msra.mxu0 %v126
  %372 = vmatpush.msra.mxu0 %v125
  %373 = vmatpush.msra.mxu0 %v124
  %374 = vmatpush.msra.mxu0 %v123
  %375 = vmatmul.f32.gmra.mxu0 %v20
  %v376 = vpop.f32.mrf.mxu0
  %v377 = vadd.f32 %v357, %v376
  %378 = vdwg.mxu0
  %379 = vmatpush.msra.mxu0 %v154
  %380 = vmatpush.msra.mxu0 %v153
  %381 = vmatpush.msra.mxu0 %v152
  %382 = vmatpush.msra.mxu0 %v151
  %383 = vmatpush.msra.mxu0 %v150
  %384 = vmatpush.msra.mxu0 %v149
  %385 = vmatpush.msra.mxu0 %v148
  %386 = vmatpush.msra.mxu0 %v147
  %387 = vmatpush.msra.mxu0 %v146
  %388 = vmatpush.msra.mxu0 %v145
  %389 = vmatpush.msra.mxu0 %v144
  %390 = vmatpush.msra.mxu0 %v143
  %391 = vmatpush.msra.mxu0 %v142
  %392 = vmatpush.msra.mxu0 %v141
  %393 = vmatpush.msra.mxu0 %v140
  %394 = vmatpush.msra.mxu0 %v139
  %395 = vmatmul.f32.gmra.mxu0 %v21
  %v396 = vpop.f32.mrf.mxu0
  %v397 = vadd.f32 %v377, %v396
  %398 = vdwg.mxu0
  %399 = vmatpush.msra.mxu0 %v170
  %400 = vmatpush.msra.mxu0 %v169
  %401 = vmatpush.msra.mxu0 %v168
  %402 = vmatpush.msra.mxu0 %v167
  %403 = vmatpush.msra.mxu0 %v166
  %404 = vmatpush.msra.mxu0 %v165
  %405 = vmatpush.msra.mxu0 %v164
  %406 = vmatpush.msra.mxu0 %v163
  %407 = vmatpush.msra.mxu0 %v162
  %408 = vmatpush.msra.mxu0 %v161
  %409 = vmatpush.msra.mxu0 %v160
  %410 = vmatpush.msra.mxu0 %v159
  %411 = vmatpush.msra.mxu0 %v158
  %412 = vmatpush.msra.mxu0 %v157
  %413 = vmatpush.msra.mxu0 %v156
  %414 = vmatpush.msra.mxu0 %v155
  %415 = vmatmul.f32.gmra.mxu0 %v22
  %v416 = vpop.f32.mrf.mxu0
  %v417 = vadd.f32 %v397, %v416
  %418 = vdwg.mxu0
  %419 = vmatpush.msra.mxu0 %v186
  %420 = vmatpush.msra.mxu0 %v185
  %421 = vmatpush.msra.mxu0 %v184
  %422 = vmatpush.msra.mxu0 %v183
  %423 = vmatpush.msra.mxu0 %v182
  %424 = vmatpush.msra.mxu0 %v181
  %425 = vmatpush.msra.mxu0 %v180
  %426 = vmatpush.msra.mxu0 %v179
  %427 = vmatpush.msra.mxu0 %v178
  %428 = vmatpush.msra.mxu0 %v177
  %429 = vmatpush.msra.mxu0 %v176
  %430 = vmatpush.msra.mxu0 %v175
  %431 = vmatpush.msra.mxu0 %v174
  %432 = vmatpush.msra.mxu0 %v173
  %433 = vmatpush.msra.mxu0 %v172
  %434 = vmatpush.msra.mxu0 %v171
  %435 = vmatmul.f32.gmra.mxu0 %v23
  %v436 = vpop.f32.mrf.mxu0
  %v437 = vadd.f32 %v417, %v436
  %438 = vdwg.mxu0
  %439 = vmatpush.msra.mxu0 %v202
  %440 = vmatpush.msra.mxu0 %v201
  %441 = vmatpush.msra.mxu0 %v200
  %442 = vmatpush.msra.mxu0 %v199
  %443 = vmatpush.msra.mxu0 %v198
  %444 = vmatpush.msra.mxu0 %v197
  %445 = vmatpush.msra.mxu0 %v196
  %446 = vmatpush.msra.mxu0 %v195
  %447 = vmatpush.msra.mxu0 %v194
  %448 = vmatpush.msra.mxu0 %v193
  %449 = vmatpush.msra.mxu0 %v192
  %450 = vmatpush.msra.mxu0 %v191
  %451 = vmatpush.msra.mxu0 %v190
  %452 = vmatpush.msra.mxu0 %v189
  %453 = vmatpush.msra.mxu0 %v188
  %454 = vmatpush.msra.mxu0 %v187
  %455 = vmatmul.f32.gmra.mxu0 %v24
  %v456 = vpop.f32.mrf.mxu0
  %v457 = vadd.f32 %v437, %v456
  %458 = vdwg.mxu0
  %459 = vmatpush.msra.mxu0 %v218
  %460 = vmatpush.msra.mxu0 %v217
  %461 = vmatpush.msra.mxu0 %v216
  %462 = vmatpush.msra.mxu0 %v215
  %463 = vmatpush.msra.mxu0 %v214
  %464 = vmatpush.msra.mxu0 %v213
  %465 = vmatpush.msra.mxu0 %v212
  %466 = vmatpush.msra.mxu0 %v211
  %467 = vmatpush.msra.mxu0 %v210
  %468 = vmatpush.msra.mxu0 %v209
  %469 = vmatpush.msra.mxu0 %v208
  %470 = vmatpush.msra.mxu0 %v207
  %471 = vmatpush.msra.mxu0 %v206
  %472 = vmatpush.msra.mxu0 %v205
  %473 = vmatpush.msra.mxu0 %v204
  %474 = vmatpush.msra.mxu0 %v203
  %475 = vmatmul.f32.gmra.mxu0 %v25
  %v476 = vpop.f32.mrf.mxu0
  %v477 = vadd.f32 %v457, %v476
  %478 = vdwg.mxu0
  %479 = vmatpush.msra.mxu0 %v234
  %480 = vmatpush.msra.mxu0 %v233
  %481 = vmatpush.msra.mxu0 %v232
  %482 = vmatpush.msra.mxu0 %v231
  %483 = vmatpush.msra.mxu0 %v230
  %484 = vmatpush.msra.mxu0 %v229
  %485 = vmatpush.msra.mxu0 %v228
  %486 = vmatpush.msra.mxu0 %v227
  %487 = vmatpush.msra.mxu0 %v226
  %488 = vmatpush.msra.mxu0 %v225
  %489 = vmatpush.msra.mxu0 %v224
  %490 = vmatpush.msra.mxu0 %v223
  %491 = vmatpush.msra.mxu0 %v222
  %492 = vmatpush.msra.mxu0 %v221
  %493 = vmatpush.msra.mxu0 %v220
  %494 = vmatpush.msra.mxu0 %v219
  %495 = vmatmul.f32.gmra.mxu0 %v26
  %v496 = vpop.f32.mrf.mxu0
  %v497 = vadd.f32 %v477, %v496
  %498 = vdwg.mxu0
  %v499 = vsub.f32 0.0, %v497
  %v500 = vmul.f32 %v499, 1.442695
  %v501 = vpow.pop %v500
  %v502 = vadd.f32 %v501, 1.0
  %v503 = vrcp.pop %v502
  %v504 = vmul.f32 %v502, %v503
  %v505 = vsub.f32 1.0, %v504
  %v506 = vmul.f32 %v503, %v505
  %v507 = vadd.f32 %v503, %v506
  %vm508 = vweird.f32 %v502
  %vm509 = vweird.f32 %v503
  %vm510 = vmor %vm508, %vm509
  %v511 = vsel %vm510, %v503, %v507
  %v512 = vand.u32 2147483647, %v502
  %vm513 = vcmp.eq.f32.partialorder %v512, 8.507059e+37
  %v514 = vand.u32 %v502, 2147483648
  %v515 = vor.u32 1.1754944e-38, %v514
  %v516 = vsel %vm513, %v515, %v511
  %517 = vst [vmem:[%s3] sm:$0xff] %v516
  // Predicated region
  $region14: #{net_forward.1} parent=0 // pred_check
    _
  $region15: #{net_forward.1} parent=0 // pred_check_branch
    %519 = sbr.rel (0) target = $region17
  $region16: #{net_forward.1} parent=0 // pred_region
    _
  $region17: #{net_forward.1} parent=0 // pred_fallthru
    _
  // Predicated region
  $region18: #{net_forward.1} parent=0 // pred_check
    _
  $region19: #{net_forward.1} parent=0 // pred_check_branch
    %521 = sbr.rel (0) target = $region21
  $region20: #{net_forward.1} parent=0 // pred_region
    _
  $region21: #{net_forward.1} parent=0 // pred_fallthru
    _

</llo_original>
